<compile_context>
chip_gen: v7x
topology: tpu7x:2x2x1
jax: 0.10.0
libtpu: 0.0.40
codegen_flags: <defaults>
</compile_context>

<pallas_src>
import jax
import jax.numpy as jnp
from jax.experimental import pallas as pl
from jax.experimental.pallas import tpu as pltpu


def dice_kernel(alpha_ref, x_ref, o_ref):
    # x_ref tile: (B, TF). Full batch resident; one feature tile per grid step.
    x = x_ref[...]
    xf = x if x.dtype == jnp.float32 else x.astype(jnp.float32)
    n = xf.shape[0]

    # Two-pass mean / unbiased variance over the batch (sublane) axis.
    avg = jnp.mean(xf, axis=0, keepdims=True)
    d = xf - avg
    var = jnp.sum(d * d, axis=0, keepdims=True) * jnp.float32(1.0 / (n - 1))
    inv_std = jax.lax.rsqrt(var)            # EUP rsqrt; replaces divide-by-std

    # Recompute (x - avg) here rather than reusing `d` so the compiler is not
    # forced to keep a full-tile temporary live across the batch reduction.
    z = (xf - avg) * inv_std + jnp.float32(1e-8)

    # x*p + alpha*x*(1-p) == x * (0.5*(1+alpha) + 0.5*(1-alpha)*tanh(z/2))
    alpha = alpha_ref[0]
    one = jnp.float32(1.0)
    half = jnp.float32(0.5)
    gate = half * (one + alpha) + (half * (one - alpha)) * jnp.tanh(half * z)
    o_ref[...] = (xf * gate).astype(o_ref.dtype)


def _vmem_capacity_bytes():
    try:
        return int(pltpu.get_tpu_info().vmem_capacity_bytes)
    except Exception:
        return 64 << 20      # conservative default (v7x per-TensorCore VMEM)


def _bytes_per_feature_col(B, itemsize):
    # Double-buffered in + out tiles, plus ~5 full-tile f32 temporaries that the
    # compiler may materialize (x-as-f32, centered, z, gate, product).
    return 2 * 2 * B * itemsize + 5 * B * 4


def _largest_divisor_leq(m, cap):
    for d in range(min(cap, m), 0, -1):
        if m % d == 0:
            return d
    return 1


def _pick_tile_f(B, F_pad, itemsize, vmem_cap):
    """F_pad is a multiple of 128. Returns a tile width (multiple of 128 that
    divides F_pad), sized in BYTES against the HBM roofline and VMEM budget."""
    m = F_pad // 128
    per_col = _bytes_per_feature_col(B, itemsize)

    # VMEM available to the pipeline (headroom left for compiler scratch).
    limit_cap = min(96 << 20, (vmem_cap * 5) // 8)
    tile_budget = limit_cap - (6 << 20)
    max_units_by_vmem = tile_budget // (per_col * 128)
    if max_units_by_vmem < 1:
        # TODO(synk): batch-tiled two-phase plan ((feature, batch) grid with an
        # "arbitrary" batch axis accumulating sum/sumsq into (1, tile_f) scratch)
        # for batches so large a single 128-lane column tile no longer fits VMEM.
        raise ValueError(
            f"Dice kernel: batch={B} too large for a full-batch-resident "
            f"feature tile within the VMEM budget ({tile_budget} bytes)."
        )

    # Per-tile byte target: larger on v7x (higher HBM BW means more bytes per
    # step are needed to hide the ~0.35us fixed per-step cost).
    target_bytes = (4 << 20) if vmem_cap <= (64 << 20) else (2 << 20)
    target_units = max(1, -(-target_bytes // (B * itemsize * 128)))

    cap_units = min(m, max_units_by_vmem)
    want = min(cap_units, target_units)
    d_tgt = _largest_divisor_leq(m, want)
    if 2 * d_tgt >= want:
        units = d_tgt
    else:
        # Divisor structure of F forces tiny target-sized tiles; prefer the
        # biggest VMEM-fitting divisor (fewer, fatter steps).
        units = _largest_divisor_leq(m, cap_units)

    # Keep >= 2 feature tiles on large arrays so the "parallel" feature axis can
    # shard across v7x's two TensorCores.
    if units == m and m >= 2 and B * F_pad * itemsize >= (4 << 20):
        units = _largest_divisor_leq(m, m // 2)

    return units * 128


def dice_forward(x, alpha, *, tile_f=None):
    """x: (B, F); alpha: (1,). Returns x*p + alpha*x*(1-p), p = sigmoid(norm+1e-8)."""
    B, F = x.shape
    assert B >= 2, "Dice batch-axis unbiased std needs at least 2 rows (N-1 > 0)"

    itemsize = jnp.dtype(x.dtype).itemsize
    vmem_cap = _vmem_capacity_bytes()

    # Pad the feature axis to a lane multiple so every tile is lane-dense
    # (unmasked vst) and the grid pipelines; padded columns are sliced off.
    F_pad = -(-F // 128) * 128
    x_in = x if F_pad == F else jnp.pad(x, ((0, 0), (0, F_pad - F)))

    if tile_f is None:
        tile_f = _pick_tile_f(B, F_pad, itemsize, vmem_cap)
    assert F_pad % tile_f == 0 and tile_f % 128 == 0
    grid_len = F_pad // tile_f

    per_col = _bytes_per_feature_col(B, itemsize)
    limit_cap = min(96 << 20, (vmem_cap * 5) // 8)   # <=40 MiB on v7x, <=80 MiB on 128-MiB chips
    vmem_limit = int(min(max(per_col * tile_f + (6 << 20), 16 << 20), limit_cap))

    # Deepen input pipelining only when the per-step transfer is too small to
    # cover the fixed per-step cost, there are enough steps, and VMEM allows.
    x_index_map = lambda j: (0, j)
    step_bytes = B * tile_f * itemsize
    if (grid_len >= 3 and step_bytes < (512 << 10)
            and per_col * tile_f + 2 * step_bytes + (6 << 20) <= limit_cap):
        x_spec = pl.BlockSpec((B, tile_f), x_index_map, pipeline_mode=pl.Buffered(3))
    else:
        x_spec = pl.BlockSpec((B, tile_f), x_index_map)

    out = pl.pallas_call(
        dice_kernel,
        out_shape=jax.ShapeDtypeStruct((B, F_pad), x.dtype),
        grid_spec=pltpu.PrefetchScalarGridSpec(
            num_scalar_prefetch=0,
            grid=(grid_len,),
            in_specs=[
                pl.BlockSpec(memory_space=pltpu.SMEM),   # alpha (1,) scalar
                x_spec,                                  # x feature tile
            ],
            out_specs=pl.BlockSpec((B, tile_f), lambda j: (0, j)),
        ),
        compiler_params=pltpu.CompilerParams(
            dimension_semantics=("parallel",),  # feature tiles shard across v7x's 2 TCs
            vmem_limit_bytes=vmem_limit,
        ),
    )(alpha, x_in)

    return out if F_pad == F else out[:, :F]


def dice_reference(x, alpha):
    avg = jnp.mean(x, axis=0)
    std = jnp.std(x, axis=0, ddof=1)   # unbiased, matches torch.std default
    norm_x = (x - avg) / std
    p = jax.nn.sigmoid(norm_x + 1e-8)
    return x * p + alpha[0] * x * (1.0 - p)


if __name__ == "__main__":
    key = jax.random.PRNGKey(0)
    B, F = 8, 256
    x = jax.random.normal(key, (B, F), dtype=jnp.float32)

    # Module initializes alpha = zeros((1,)) (learnable scalar).
    alpha = jnp.zeros((1,), dtype=jnp.float32)

    out = dice_forward(x, alpha)
    out = jax.block_until_ready(out)

    ref = dice_reference(x, alpha)
    assert out.shape == (B, F)
    assert jnp.allclose(out, ref, atol=1e-5, rtol=1e-5), "mismatch vs reference"

    print("KERNEL_OK")
</pallas_src>

<mosaic_0001>
module attributes {stable_mosaic.version = 11 : i64} {
  func.func @dice_kernel(%arg0: i32, %arg1: memref<1xf32, #tpu.memory_space<smem>>, %arg2: memref<8x256xf32, #tpu.memory_space<vmem>>, %arg3: memref<8x256xf32, #tpu.memory_space<vmem>>) attributes {dimension_semantics = [#tpu.dimension_semantics<parallel>], iteration_bounds = array<i64: 1>, scalar_prefetch = 0 : i64, scratch_operands = 0 : i64, tpu.core_type = #tpu.core_type<tc>, window_params = [{transform_indices = @transform_0, window_bounds = array<i64: 1>}, {transform_indices = @transform_1, window_bounds = array<i64: 8, 256>}, {transform_indices = @transform_2, window_bounds = array<i64: 8, 256>}]} {
    %c0 = arith.constant 0 : index
    %c0_0 = arith.constant 0 : index
    %0 = vector.load %arg2[%c0, %c0_0] : memref<8x256xf32, #tpu.memory_space<vmem>>, vector<8x256xf32>
    %cst = arith.constant dense<0.000000e+00> : vector<256xf32>
    %1 = vector.multi_reduction <add>, %0, %cst [0] : vector<8x256xf32> to vector<256xf32>
    %2 = vector.shape_cast %1 : vector<256xf32> to vector<1x256xf32>
    %cst_1 = arith.constant 8.000000e+00 : f32
    %3 = vector.broadcast %cst_1 : f32 to vector<1x256xf32>
    %4 = arith.divf %2, %3 : vector<1x256xf32>
    %5 = vector.broadcast %4 : vector<1x256xf32> to vector<8x256xf32>
    %6 = arith.subf %0, %5 : vector<8x256xf32>
    %7 = arith.mulf %6, %6 : vector<8x256xf32>
    %cst_2 = arith.constant dense<0.000000e+00> : vector<256xf32>
    %8 = vector.multi_reduction <add>, %7, %cst_2 [0] : vector<8x256xf32> to vector<256xf32>
    %9 = vector.shape_cast %8 : vector<256xf32> to vector<1x256xf32>
    %cst_3 = arith.constant 0.142857149 : f32
    %10 = vector.broadcast %cst_3 : f32 to vector<1x256xf32>
    %11 = arith.mulf %9, %10 : vector<1x256xf32>
    %12 = math.rsqrt %11 : vector<1x256xf32>
    %13 = vector.broadcast %4 : vector<1x256xf32> to vector<8x256xf32>
    %14 = arith.subf %0, %13 : vector<8x256xf32>
    %15 = vector.broadcast %12 : vector<1x256xf32> to vector<8x256xf32>
    %16 = arith.mulf %14, %15 : vector<8x256xf32>
    %cst_4 = arith.constant 9.99999993E-9 : f32
    %17 = vector.broadcast %cst_4 : f32 to vector<8x256xf32>
    %18 = arith.addf %16, %17 : vector<8x256xf32>
    %c0_5 = arith.constant 0 : index
    %19 = memref.load %arg1[%c0_5] : memref<1xf32, #tpu.memory_space<smem>>
    %cst_6 = arith.constant 1.000000e+00 : f32
    %20 = arith.addf %cst_6, %19 : f32
    %cst_7 = arith.constant 5.000000e-01 : f32
    %21 = arith.mulf %cst_7, %20 : f32
    %cst_8 = arith.constant 1.000000e+00 : f32
    %22 = arith.subf %cst_8, %19 : f32
    %cst_9 = arith.constant 5.000000e-01 : f32
    %23 = arith.mulf %cst_9, %22 : f32
    %cst_10 = arith.constant 5.000000e-01 : f32
    %24 = vector.broadcast %cst_10 : f32 to vector<8x256xf32>
    %25 = arith.mulf %24, %18 : vector<8x256xf32>
    %26 = math.tanh %25 : vector<8x256xf32>
    %27 = vector.broadcast %23 : f32 to vector<8x256xf32>
    %28 = arith.mulf %27, %26 : vector<8x256xf32>
    %29 = vector.broadcast %21 : f32 to vector<8x256xf32>
    %30 = arith.addf %29, %28 : vector<8x256xf32>
    %31 = arith.mulf %0, %30 : vector<8x256xf32>
    %c0_11 = arith.constant 0 : index
    %c0_12 = arith.constant 0 : index
    %32 = vector.load %arg3[%c0_11, %c0_12] : memref<8x256xf32, #tpu.memory_space<vmem>>, vector<8x256xf32>
    tpu.vector_store %arg3[%c0_11, %c0_12], %31 {strides = array<i32>} : memref<8x256xf32, #tpu.memory_space<vmem>>, vector<8x256xf32>,
    return
  }
  func.func @transform_0(%arg0: i32) -> i32 {
    %c0_i32 = arith.constant 0 : i32
    %c0_i32_0 = arith.constant 0 : i32
    return %c0_i32 : i32
  }
  func.func @transform_1(%arg0: i32) -> (i32, i32) {
    %c0_i32 = arith.constant 0 : i32
    %c0_i32_0 = arith.constant 0 : i32
    return %c0_i32, %arg0 : i32, i32
  }
  func.func @transform_2(%arg0: i32) -> (i32, i32) {
    %c0_i32 = arith.constant 0 : i32
    %c0_i32_0 = arith.constant 0 : i32
    return %c0_i32, %arg0 : i32, i32
  }
}

</mosaic_0001>

<llo_original>
// kernel: tpu_custom_call.1
$region0: #{tpu_custom_call.1}
  #allocation0 [shape = 'u32[]', space=smem, size = 0x4, offset = 0x4, fixed_abs, tag = 'smem constant byte address 0x4 - core index']
  #allocation1 [shape = 'u32[144,128]{1,0:T(1,128)}', space=vmem, size = 0x12000, scoped, tag = 'internal scratch']
  #allocation2 [shape = 'f32[1]{0:T(128)S(6)}', space=smem, size = 0x200, scoped, tag = 'scoped memory for tpu_custom_call.1']
  %s0 = inlined_call_operand.<no memory space> [shape: f32[1], index: 0, kind: input, shape index: {}]
  %s1 = inlined_call_operand.hbm [shape: f32[8,256], index: 1, kind: input, shape index: {}]
  %s2 = inlined_call_operand.hbm [shape: f32[8,256], index: 2, kind: output, shape index: {}]
  %s3 = sld [smem:[#allocation0]]
  $region22: #{tpu_custom_call.1} parent=0
    _
  %s5 = ssub.s32 1, %s3
  %s6 = scalar_select 0, %s5, %s3
  %7 = sst [smem:[#allocation2]] %s0
  $region1: #{tpu_custom_call.1} parent=0
    #allocation3 [shape = 'u8[8192]{0}', space=vmem, size = 0x2000, scoped, tag = 'input window, operand 1, single buffered']
    #allocation4 [shape = 's32[1]{0}', space=sflag, size = 0x4, scoped, tag = 'scoped memory for tpu_custom_call.1']
    #allocation5 [shape = 's32[1]{0}', space=sflag, size = 0x4, scoped, tag = 'scoped memory for tpu_custom_call.1']
    #allocation6 [shape = 'u8[8192]{0}', space=vmem, size = 0x2000, scoped, tag = 'output window, operand 0, single buffered']
    %8 = vsyncpa [#allocation4], 0
    %9 = vsyncpa [#allocation5], 0
    // Predicated region
    $region2: #{tpu_custom_call.1} parent=1 // pred_check
      _
    $region3: #{tpu_custom_call.1} parent=1 // pred_check_branch
      %11 = sbr.rel (0) target = $region5
    $region4: #{tpu_custom_call.1} parent=1 // pred_region
      _
    $region5: #{tpu_custom_call.1} parent=1 // pred_fallthru
      _
    // Predicated region
    $region6: #{tpu_custom_call.1} parent=1 // pred_check
      _
    $region7: #{tpu_custom_call.1} parent=1 // pred_check_branch
      %13 = sbr.rel (0) target = $region9
    $region8: #{tpu_custom_call.1} parent=1 // pred_region
      %s15 = ssub.s32 256, 256
      %16 = vsyncadd [#allocation4], %s15
      %s18 = sshll.u32 [#allocation3], 4
      %s19 = int_to_ptr.vmem [resolvable:$true] %s18
      %21 = dma.hbm_to_vmem [thread:$0]  %s1, 256, %s19, [#allocation4]
    $region9: #{tpu_custom_call.1} parent=1 // pred_fallthru
      _
    // Predicated region
    $region10: #{tpu_custom_call.1} parent=1 // pred_check
      _
    $region11: #{tpu_custom_call.1} parent=1 // pred_check_branch
      %23 = sbr.rel (0) target = $region13
    $region12: #{tpu_custom_call.1} parent=1 // pred_region
      %24 = dma.done [#allocation4], 256
    $region13: #{tpu_custom_call.1} parent=1 // pred_fallthru
      _
    %v25 = vld [vmem:[#allocation3] sm:$0xff]
    %v26 = vld [vmem:[#allocation3 + $0x8] sm:$0xff]
    %v27 = vrot.slane %v25, 4
    %v28 = vadd.f32 %v25, %v27
    %v29 = vrot.slane %v28, 2
    %v30 = vadd.f32 %v28, %v29
    %v31 = vrot.slane %v30, 1
    %v32 = vadd.f32 %v30, %v31
    %v33 = vrot.slane %v26, 4
    %v34 = vadd.f32 %v26, %v33
    %v35 = vrot.slane %v34, 2
    %v36 = vadd.f32 %v34, %v35
    %v37 = vrot.slane %v36, 1
    %v38 = vadd.f32 %v36, %v37
    %v39 = vrcp.pop 8.0
    %v40 = vmul.f32 %v32, %v39
    %v41 = vmul.f32 %v38, %v39
    %v42 = vsub.f32 %v25, %v40
    %v43 = vsub.f32 %v26, %v41
    %v44 = vmul.f32 %v42, %v42
    %v45 = vmul.f32 %v43, %v43
    %v46 = vrot.slane %v44, 4
    %v47 = vadd.f32 %v44, %v46
    %v48 = vrot.slane %v47, 2
    %v49 = vadd.f32 %v47, %v48
    %v50 = vrot.slane %v49, 1
    %v51 = vadd.f32 %v49, %v50
    %v52 = vrot.slane %v45, 4
    %v53 = vadd.f32 %v45, %v52
    %v54 = vrot.slane %v53, 2
    %v55 = vadd.f32 %v53, %v54
    %v56 = vrot.slane %v55, 1
    %v57 = vadd.f32 %v55, %v56
    %v58 = vmul.f32 %v51, 0.14285715
    %v59 = vmul.f32 %v57, 0.14285715
    %v60 = vrsqrt.pop %v58
    %v61 = vrsqrt.pop %v59
    %v62 = vmul.f32 %v42, %v60
    %v63 = vmul.f32 %v43, %v61
    %v64 = vadd.f32 %v62, 1e-08
    %v65 = vadd.f32 %v63, 1e-08
    %s66 = sld [smem:[#allocation2]]
    %s67 = sadd.f32 %s66, 1.0
    %s68 = smul.f32 %s67, 0.5
    %s69 = ssub.f32 1.0, %s66
    %s70 = smul.f32 %s69, 0.5
    %v71 = vmul.f32 %v64, 0.5
    %v72 = vmul.f32 %v65, 0.5
    %v73 = vtanh.pop %v71
    %v74 = vtanh.pop %v72
    %v75 = vstv %s70
    %v76 = vmul.f32 %v75, %v73
    %v77 = vmul.f32 %v75, %v74
    %v78 = vstv %s68
    %v79 = vadd.f32 %v78, %v76
    %v80 = vadd.f32 %v78, %v77
    %v81 = vmul.f32 %v25, %v79
    %v82 = vmul.f32 %v26, %v80
    %83 = vst [vmem:[#allocation6] sm:$0xff] %v81
    %84 = vst [vmem:[#allocation6 + $0x8] sm:$0xff] %v82
    // Predicated region
    $region14: #{tpu_custom_call.1} parent=1 // pred_check
      _
    $region15: #{tpu_custom_call.1} parent=1 // pred_check_branch
      %86 = sbr.rel (0) target = $region17
    $region16: #{tpu_custom_call.1} parent=1 // pred_region
      %s88 = ssub.s32 256, 256
      %89 = vsyncadd [#allocation5], %s88
      %s91 = sshll.u32 [#allocation6], 4
      %s92 = int_to_ptr.vmem [resolvable:$true] %s91
      %94 = dma.vmem_to_hbm [thread:$0]  %s92, 256, %s2, [#allocation5]
    $region17: #{tpu_custom_call.1} parent=1 // pred_fallthru
      _
    // Predicated region
    $region18: #{tpu_custom_call.1} parent=1 // pred_check
      _
    $region19: #{tpu_custom_call.1} parent=1 // pred_check_branch
      %96 = sbr.rel (0) target = $region21
    $region20: #{tpu_custom_call.1} parent=1 // pred_region
      %97 = dma.done [#allocation5], 256
    $region21: #{tpu_custom_call.1} parent=1 // pred_fallthru
      _
    %98 = vsyncpa [#allocation4], 1
    %99 = vsyncpa [#allocation5], 1

</llo_original>
